<compile_context>
chip_gen: v6e
topology: v6e:2x2x1
jax: 0.10.0
libtpu: 0.0.40
codegen_flags: <defaults>
</compile_context>

<pallas_src>
import functools

import numpy as np
import jax
import jax.numpy as jnp
from jax.experimental import pallas as pl
from jax.experimental.pallas import tpu as pltpu


# --------------------------------------------------------------------------- kernel

def _gated_attention_kernel(nvalid_ref,                       # SMEM (1,) int32 (scalar prefetch)
                            x_ref, wvu_ref, bvu_ref, wa_ref, ba_ref, wc_ref, bc_ref,
                            scores_ref, m_out_ref, logits_ref,
                            m_sc, l_sc, acc_sc,
                            *, mask_rows: bool):
    k = pl.program_id(0)
    tn = x_ref.shape[0]
    d = wa_ref.shape[1]

    @pl.when(k == 0)
    def _():
        m_sc[...] = jnp.full_like(m_sc, -jnp.inf)
        l_sc[...] = jnp.zeros_like(l_sc)
        acc_sc[...] = jnp.zeros_like(acc_sc)

    x_f32 = x_ref[...]                                        # (tn, L) f32
    if mask_rows:
        # Ragged tail: zero the OOB rows of the partially-loaded last tile so that
        # garbage/NaN cannot poison p @ x (0 * NaN hazard); scores masked below.
        rows = k * tn + jax.lax.broadcasted_iota(jnp.int32, (tn, 1), 0)
        x_f32 = jnp.where(rows < nvalid_ref[0], x_f32, 0.0)
    x_bf = x_f32.astype(jnp.bfloat16)

    # Fused gated branches: ONE bf16 MXU matmul producing (tn, 2D); bias/activations f32.
    vu = jnp.dot(x_bf, wvu_ref[...], preferred_element_type=jnp.float32) + bvu_ref[...]
    a_v = jnp.tanh(vu[:, :d])
    a_u = jax.nn.sigmoid(vu[:, d:])
    gated = (a_v * a_u).astype(jnp.bfloat16)                  # (tn, D)

    # Lane-dense attention scores: (1, D) . (tn, D)^T -> (1, tn).
    # NOTE(review): if this dot_general materializes an XLU transpose of the full
    # (tn, D) gated tile on v6e, switch to gated @ wa^T and transpose only the (tn,1).
    s = jax.lax.dot_general(wa_ref[...], gated,
                            (((1,), (1,)), ((), ())),
                            preferred_element_type=jnp.float32) + ba_ref[...]
    if mask_rows:
        col = k * tn + jax.lax.broadcasted_iota(jnp.int32, (1, tn), 1)
        s = jnp.where(col < nvalid_ref[0], s, -jnp.inf)
    scores_ref[...] = s

    # Online-softmax accumulation of sum_i softmax(s)_i * x_i (exact when grid is 1 step).
    m_prev = m_sc[...]                                        # (1, 1)
    m_new = jnp.maximum(m_prev, jnp.max(s, axis=-1, keepdims=True))
    alpha = jnp.exp(m_prev - m_new)
    p = jnp.exp(s - m_new)                                    # (1, tn), exactly 0 on masked cols
    l_sc[...] = alpha * l_sc[...] + jnp.sum(p, axis=-1, keepdims=True)
    acc_sc[...] = alpha * acc_sc[...] + jnp.dot(
        p.astype(jnp.bfloat16), x_bf, preferred_element_type=jnp.float32)
    m_sc[...] = m_new

    @pl.when(k == pl.num_programs(0) - 1)
    def _():
        m_bag = acc_sc[...] / l_sc[...]                       # exact divide (review)
        m_out_ref[...] = m_bag.astype(m_out_ref.dtype)
        logits_ref[...] = (jnp.dot(m_bag, wc_ref[...], preferred_element_type=jnp.float32)
                           + bc_ref[...]).astype(logits_ref.dtype)


# --------------------------------------------------------------------------- sizing

@functools.lru_cache(maxsize=1)
def _vmem_budgets():
    """(tile_budget_bytes, vmem_limit_bytes), generation-aware.

    v5e/v6e have 128 MiB physical VMEM -> big x tiles, high limit.
    v7x has 64 MiB -> conservative budgets.  Falls back safely if the query fails."""
    try:
        cap = int(pltpu.get_tpu_info().vmem_capacity_bytes)
    except Exception:
        cap = 64 * 1024 * 1024
    if cap >= 96 * 1024 * 1024:                      # v5e / v6e
        return 20 * 1024 * 1024, 96 * 1024 * 1024
    return 8 * 1024 * 1024, 40 * 1024 * 1024         # v7x / unknown


def _pick_block_n(n, l, tile_budget_bytes):
    """Whole bag in one grid step when the f32 x tile fits the per-tile budget;
    otherwise the largest 128-aligned tile under the budget (amortizes the ~0.35us/step
    pipeline overhead).  No host-side padding: block_n == n is legal for a full-array
    block; otherwise block_n is a 128-multiple and the last tile is masked in-kernel."""
    cap = max(128, min(2048, (tile_budget_bytes // (l * 4)) // 128 * 128))
    return n if n <= cap else cap


# --------------------------------------------------------------------------- pallas_call

def _gated_attention_pallas(n_valid, x, wvu, bvu, wa, ba, wc, bc, *,
                            block_n, vmem_limit_bytes):
    n, l = x.shape
    d2 = wvu.shape[1]
    d = wa.shape[1]
    c = wc.shape[1]
    grid = (pl.cdiv(n, block_n),)
    mask_rows = (n % block_n) != 0                   # static: aligned path pays nothing

    const = lambda k, n_ref: (0, 0)
    grid_spec = pltpu.PrefetchScalarGridSpec(
        num_scalar_prefetch=1,
        grid=grid,
        in_specs=[
            pl.BlockSpec((block_n, l), lambda k, n_ref: (k, 0)),   # x tile (only streamed input)
            pl.BlockSpec((l, d2), const),                          # [Wv | Wu]  bf16
            pl.BlockSpec((1, d2), const),                          # [bv | bu]  f32
            pl.BlockSpec((1, d), const),                           # wa row     bf16
            pl.BlockSpec((1, 1), const),                           # ba
            pl.BlockSpec((l, c), const),                           # Wc
            pl.BlockSpec((1, c), const),                           # bc
        ],
        out_specs=[
            pl.BlockSpec((1, block_n), lambda k, n_ref: (0, k)),   # lane-dense raw scores (1, N)
            pl.BlockSpec((1, l), const),                           # M (1, L)
            pl.BlockSpec((1, c), const),                           # logits (1, C)
        ],
        scratch_shapes=[
            pltpu.VMEM((1, 1), jnp.float32),                       # running max
            pltpu.VMEM((1, 1), jnp.float32),                       # running denom
            pltpu.VMEM((1, l), jnp.float32),                       # running weighted sum
        ],
    )
    return pl.pallas_call(
        functools.partial(_gated_attention_kernel, mask_rows=mask_rows),
        out_shape=(
            jax.ShapeDtypeStruct((1, n), jnp.float32),
            jax.ShapeDtypeStruct((1, l), jnp.float32),
            jax.ShapeDtypeStruct((1, c), jnp.float32),
        ),
        grid_spec=grid_spec,
        compiler_params=pltpu.CompilerParams(
            dimension_semantics=("arbitrary",),
            vmem_limit_bytes=vmem_limit_bytes,
        ),
    )(n_valid, x, wvu, bvu, wa, ba, wc, bc)


# --------------------------------------------------------------------------- module glue

@functools.partial(jax.jit, static_argnames=("block_n", "vmem_limit_bytes"))
def _pooled_forward(x, wvu, bvu, wa_row, ba, wc, bc, *, block_n, vmem_limit_bytes):
    n = x.shape[0]
    n_valid = jnp.full((1,), n, dtype=jnp.int32)
    scores, m_bag, logits = _gated_attention_pallas(
        n_valid, x, wvu, bvu, wa_row, ba, wc, bc,
        block_n=block_n, vmem_limit_bytes=vmem_limit_bytes)
    # A = softmax(transpose(scores), dim=1) -> (1, N); masked tail entries are -inf
    # but were dropped on writeback anyway (scores has exactly N columns).
    A = jax.nn.softmax(scores, axis=1)
    Y_prob = jax.nn.softmax(logits, axis=1)
    Y_hat = jnp.argmax(logits, axis=1).reshape(-1, 1)
    return logits, Y_prob, Y_hat, A, m_bag


def prepare_fused_weights(params):
    """One-time weight prep hoisted out of the per-bag jitted path (review): fuse
    Wv|Wu into a single bf16 (L, 2D) MXU weight, bf16 attention row, f32 biases."""
    return dict(
        wvu=jnp.concatenate([params["wv"], params["wu"]], axis=1).astype(jnp.bfloat16),
        bvu=jnp.concatenate([params["bv"], params["bu"]], axis=1).astype(jnp.float32),
        wa_row=params["wa"].reshape(1, -1).astype(jnp.bfloat16),
        ba=params["ba"].astype(jnp.float32),
        wc=params["wc"].astype(jnp.float32),
        bc=params["bc"].astype(jnp.float32),
    )


def init_params(key, L, D, n_classes):
    ks = jax.random.split(key, 10)
    s = 0.02
    return dict(
        wv=jax.random.normal(ks[0], (L, D), jnp.float32) * s,
        bv=jax.random.normal(ks[1], (1, D), jnp.float32) * s,
        wu=jax.random.normal(ks[2], (L, D), jnp.float32) * s,
        bu=jax.random.normal(ks[3], (1, D), jnp.float32) * s,
        wa=jax.random.normal(ks[4], (D, 1), jnp.float32) * s,
        ba=jax.random.normal(ks[5], (1, 1), jnp.float32) * s,
        wc=jax.random.normal(ks[6], (L, n_classes), jnp.float32) * s,
        bc=jax.random.normal(ks[7], (1, n_classes), jnp.float32) * s,
        inst_w=jax.random.normal(ks[8], (n_classes, L, 2), jnp.float32) * s,
        inst_b=jax.random.normal(ks[9], (n_classes, 1, 2), jnp.float32) * s,
    )


def _cross_entropy(logits, targets):
    lse = jax.scipy.special.logsumexp(logits, axis=1)
    picked = jnp.take_along_axis(logits, targets[:, None], axis=1)[:, 0]
    return jnp.mean(lse - picked)


def gated_attention_forward(params, x, label=None, instance_eval=True, *,
                            n_classes=2, k_sample=8, subtyping=False,
                            block_n=None, fused=None):
    """Mirrors GatedAttention.forward; returns (logits, Y_prob, Y_hat, A, results_dict, M)."""
    N, L = x.shape
    tile_budget, vmem_limit = _vmem_budgets()
    if block_n is None:
        block_n = _pick_block_n(N, L, tile_budget)
    if fused is None:
        fused = prepare_fused_weights(params)

    logits, Y_prob, Y_hat, A, M = _pooled_forward(
        x, fused["wvu"], fused["bvu"], fused["wa_row"], fused["ba"],
        fused["wc"], fused["bc"], block_n=block_n, vmem_limit_bytes=vmem_limit)

    results_dict = {}
    if instance_eval:
        # Per-class branching on the label is inherent data-dependent control flow
        # (torch uses .item()): one tiny host sync here; everything else stays on device.
        inst_labels = np.asarray(
            jax.nn.one_hot(jnp.asarray(label).reshape(-1), n_classes)).reshape(n_classes)
        A_flat = A[0]
        total_inst_loss = jnp.float32(0.0)
        preds_list, targets_list = [], []
        for i in range(n_classes):
            inst_label = int(inst_labels[i])
            Wi, bi = params["inst_w"][i], params["inst_b"][i]
            if inst_label == 1:
                top_p_ids = jax.lax.top_k(A_flat, k_sample)[1]
                top_n_ids = jax.lax.top_k(-A_flat, k_sample)[1]
                all_inst = jnp.concatenate([x[top_p_ids], x[top_n_ids]], axis=0)
                targets = jnp.concatenate([jnp.ones((k_sample,), jnp.int32),
                                           jnp.zeros((k_sample,), jnp.int32)])
            elif subtyping:
                top_p_ids = jax.lax.top_k(A_flat, k_sample)[1]
                all_inst = x[top_p_ids]
                targets = jnp.zeros((k_sample,), jnp.int32)
            else:
                continue
            inst_logits = all_inst @ Wi + bi                        # (2k or k, 2)
            preds_list.append(jnp.argmax(inst_logits, axis=1))
            targets_list.append(targets)
            total_inst_loss = total_inst_loss + _cross_entropy(inst_logits, targets)
        if subtyping:
            total_inst_loss = total_inst_loss / n_classes
        results_dict = {
            "instance_loss": total_inst_loss,
            "inst_labels": (np.asarray(jnp.concatenate(targets_list))
                            if targets_list else np.array([])),
            "inst_preds": (np.asarray(jnp.concatenate(preds_list))
                           if preds_list else np.array([])),
        }

    return logits, Y_prob, Y_hat, A, results_dict, M


# --------------------------------------------------------------------------- main

if __name__ == "__main__":
    # Small shapes consistent with the module: N instances (NOT a multiple of 128,
    # to exercise the ragged path), L features.
    N, L, D, C, K = 250, 128, 64, 2, 8

    key = jax.random.PRNGKey(0)
    k_param, k_x = jax.random.split(key)
    params = init_params(k_param, L, D, C)
    fused_w = prepare_fused_weights(params)          # hoisted weight prep (once)
    x = jax.random.normal(k_x, (N, L), jnp.float32)
    label = jnp.array([1], dtype=jnp.int32)

    # Main call: whole bag in one grid step (block_n == N).
    logits, Y_prob, Y_hat, A, results_dict, M = gated_attention_forward(
        params, x, label=label, instance_eval=True,
        n_classes=C, k_sample=K, subtyping=False, fused=fused_w)
    jax.block_until_ready((logits, Y_prob, Y_hat, A, M))

    # Pure-JAX f32 reference of the pooled path (tolerances allow bf16 MXU operands).
    a_v = jnp.tanh(x @ params["wv"] + params["bv"])
    a_u = jax.nn.sigmoid(x @ params["wu"] + params["bu"])
    s_ref = (a_v * a_u) @ params["wa"] + params["ba"]
    A_ref = jax.nn.softmax(s_ref.reshape(1, N), axis=1)
    M_ref = A_ref @ x
    logits_ref = M_ref @ params["wc"] + params["bc"]
    assert jnp.allclose(A, A_ref, atol=2e-4), "attention mismatch"
    assert jnp.allclose(M, M_ref, atol=3e-3), "pooled feature mismatch"
    assert jnp.allclose(logits, logits_ref, atol=3e-3), "logits mismatch"
    assert A.shape == (1, N) and M.shape == (1, L) and logits.shape == (1, C)
    assert Y_hat.shape == (1, 1) and Y_prob.shape == (1, C)
    assert results_dict["inst_preds"].shape == (2 * K,)

    # Second call forces a multi-step grid with a partial last tile (250 = 128 + 122):
    # exercises the online-softmax accumulation and the in-kernel ragged-tail masking.
    logits2, _, _, A2, _, M2 = gated_attention_forward(
        params, x, instance_eval=False, n_classes=C, k_sample=K,
        block_n=128, fused=fused_w)
    jax.block_until_ready((logits2, A2, M2))
    assert jnp.allclose(A2, A_ref, atol=2e-4), "attention mismatch (ragged multi-tile)"
    assert jnp.allclose(M2, M_ref, atol=3e-3), "pooled feature mismatch (ragged multi-tile)"
    assert jnp.allclose(logits2, logits_ref, atol=3e-3), "logits mismatch (ragged multi-tile)"

    print("KERNEL_OK")
</pallas_src>

<mosaic_0001>
module attributes {stable_mosaic.version = 11 : i64} {
  func.func @_gated_attention_kernel(%arg0: i32, %arg1: memref<1xi32, #tpu.memory_space<smem>>, %arg2: memref<250x128xf32, #tpu.memory_space<vmem>>, %arg3: memref<128x128xbf16, #tpu.memory_space<vmem>>, %arg4: memref<1x128xf32, #tpu.memory_space<vmem>>, %arg5: memref<1x64xbf16, #tpu.memory_space<vmem>>, %arg6: memref<1x1xf32, #tpu.memory_space<vmem>>, %arg7: memref<128x2xf32, #tpu.memory_space<vmem>>, %arg8: memref<1x2xf32, #tpu.memory_space<vmem>>, %arg9: memref<1x250xf32, #tpu.memory_space<vmem>>, %arg10: memref<1x128xf32, #tpu.memory_space<vmem>>, %arg11: memref<1x2xf32, #tpu.memory_space<vmem>>, %arg12: memref<1x1xf32, #tpu.memory_space<vmem>>, %arg13: memref<1x1xf32, #tpu.memory_space<vmem>>, %arg14: memref<1x128xf32, #tpu.memory_space<vmem>>) attributes {dimension_semantics = [#tpu.dimension_semantics<arbitrary>], iteration_bounds = array<i64: 1>, scalar_prefetch = 1 : i64, scratch_operands = 3 : i64, tpu.core_type = #tpu.core_type<tc>, window_params = [{transform_indices = @transform_0, window_bounds = array<i64: 250, 128>}, {pipeline_mode = #tpu.pipeline_mode<synchronous>, transform_indices = @transform_1, window_bounds = array<i64: 128, 128>}, {pipeline_mode = #tpu.pipeline_mode<synchronous>, transform_indices = @transform_2, window_bounds = array<i64: 1, 128>}, {pipeline_mode = #tpu.pipeline_mode<synchronous>, transform_indices = @transform_3, window_bounds = array<i64: 1, 64>}, {pipeline_mode = #tpu.pipeline_mode<synchronous>, transform_indices = @transform_4, window_bounds = array<i64: 1, 1>}, {pipeline_mode = #tpu.pipeline_mode<synchronous>, transform_indices = @transform_5, window_bounds = array<i64: 128, 2>}, {pipeline_mode = #tpu.pipeline_mode<synchronous>, transform_indices = @transform_6, window_bounds = array<i64: 1, 2>}, {transform_indices = @transform_7, window_bounds = array<i64: 1, 250>}, {pipeline_mode = #tpu.pipeline_mode<synchronous>, transform_indices = @transform_8, window_bounds = array<i64: 1, 128>}, {pipeline_mode = #tpu.pipeline_mode<synchronous>, transform_indices = @transform_9, window_bounds = array<i64: 1, 2>}]} {
    %c0_i32 = arith.constant 0 : i32
    %0 = arith.cmpi eq, %arg0, %c0_i32 : i32
    %1 = arith.extui %0 : i1 to i32
    %c0_i32_0 = arith.constant 0 : i32
    %2 = arith.cmpi ne, %1, %c0_i32_0 : i32
    scf.if %2 {
      %cst_31 = arith.constant 0xFF800000 : f32
      %52 = vector.broadcast %cst_31 : f32 to vector<1x1xf32>
      %c0_32 = arith.constant 0 : index
      %c0_33 = arith.constant 0 : index
      %53 = vector.load %arg12[%c0_32, %c0_33] : memref<1x1xf32, #tpu.memory_space<vmem>>, vector<1x1xf32>
      tpu.vector_store %arg12[%c0_32, %c0_33], %52 {strides = array<i32>} : memref<1x1xf32, #tpu.memory_space<vmem>>, vector<1x1xf32>,
      %cst_34 = arith.constant 0.000000e+00 : f32
      %54 = vector.broadcast %cst_34 : f32 to vector<1x1xf32>
      %c0_35 = arith.constant 0 : index
      %c0_36 = arith.constant 0 : index
      %55 = vector.load %arg13[%c0_35, %c0_36] : memref<1x1xf32, #tpu.memory_space<vmem>>, vector<1x1xf32>
      tpu.vector_store %arg13[%c0_35, %c0_36], %54 {strides = array<i32>} : memref<1x1xf32, #tpu.memory_space<vmem>>, vector<1x1xf32>,
      %cst_37 = arith.constant 0.000000e+00 : f32
      %56 = vector.broadcast %cst_37 : f32 to vector<1x128xf32>
      %c0_38 = arith.constant 0 : index
      %c0_39 = arith.constant 0 : index
      %57 = vector.load %arg14[%c0_38, %c0_39] : memref<1x128xf32, #tpu.memory_space<vmem>>, vector<1x128xf32>
      tpu.vector_store %arg14[%c0_38, %c0_39], %56 {strides = array<i32>} : memref<1x128xf32, #tpu.memory_space<vmem>>, vector<1x128xf32>,
    } else {
    }
    %c0 = arith.constant 0 : index
    %c0_1 = arith.constant 0 : index
    %3 = vector.load %arg2[%c0, %c0_1] : memref<250x128xf32, #tpu.memory_space<vmem>>, vector<250x128xf32>
    %4 = arith.truncf %3 : vector<250x128xf32> to vector<250x128xbf16>
    %c0_2 = arith.constant 0 : index
    %c0_3 = arith.constant 0 : index
    %5 = vector.load %arg3[%c0_2, %c0_3] : memref<128x128xbf16, #tpu.memory_space<vmem>>, vector<128x128xbf16>
    %cst = arith.constant dense<0.000000e+00> : vector<250x128xf32>
    %6 = tpu.matmul %4, %5, %cst {dimension_numbers = #tpu.dot_dimension_numbers<[1], [0], [0], [1], [0, 0, 1, 1], [], []>} : vector<250x128xbf16>, vector<128x128xbf16>, vector<250x128xf32> -> vector<250x128xf32>
    %c0_4 = arith.constant 0 : index
    %c0_5 = arith.constant 0 : index
    %7 = vector.load %arg4[%c0_4, %c0_5] : memref<1x128xf32, #tpu.memory_space<vmem>>, vector<1x128xf32>
    %8 = vector.broadcast %7 : vector<1x128xf32> to vector<250x128xf32>
    %9 = arith.addf %6, %8 : vector<250x128xf32>
    %10 = vector.extract_strided_slice %9 {offsets = [0, 0], sizes = [250, 64], strides = [1, 1]} : vector<250x128xf32> to vector<250x64xf32>
    %11 = math.tanh %10 : vector<250x64xf32>
    %12 = vector.extract_strided_slice %9 {offsets = [0, 64], sizes = [250, 64], strides = [1, 1]} : vector<250x128xf32> to vector<250x64xf32>
    %13 = arith.negf %12 : vector<250x64xf32>
    %14 = math.exp %13 : vector<250x64xf32>
    %cst_6 = arith.constant 1.000000e+00 : f32
    %15 = vector.broadcast %cst_6 : f32 to vector<250x64xf32>
    %16 = arith.addf %15, %14 : vector<250x64xf32>
    %17 = arith.divf %15, %16 : vector<250x64xf32>
    %18 = arith.mulf %11, %17 : vector<250x64xf32>
    %19 = arith.truncf %18 : vector<250x64xf32> to vector<250x64xbf16>
    %c0_7 = arith.constant 0 : index
    %c0_8 = arith.constant 0 : index
    %20 = vector.load %arg5[%c0_7, %c0_8] : memref<1x64xbf16, #tpu.memory_space<vmem>>, vector<1x64xbf16>
    %cst_9 = arith.constant dense<0.000000e+00> : vector<1x250xf32>
    %21 = tpu.matmul %20, %19, %cst_9 {dimension_numbers = #tpu.dot_dimension_numbers<[1], [1], [0], [0], [0, 0, 1, 0], [], []>} : vector<1x64xbf16>, vector<250x64xbf16>, vector<1x250xf32> -> vector<1x250xf32>
    %c0_10 = arith.constant 0 : index
    %c0_11 = arith.constant 0 : index
    %22 = vector.load %arg6[%c0_10, %c0_11] : memref<1x1xf32, #tpu.memory_space<vmem>>, vector<1x1xf32>
    %23 = vector.broadcast %22 : vector<1x1xf32> to vector<1x250xf32>
    %24 = arith.addf %21, %23 : vector<1x250xf32>
    %c0_12 = arith.constant 0 : index
    %c0_13 = arith.constant 0 : index
    %25 = vector.load %arg9[%c0_12, %c0_13] : memref<1x250xf32, #tpu.memory_space<vmem>>, vector<1x250xf32>
    tpu.vector_store %arg9[%c0_12, %c0_13], %24 {strides = array<i32>} : memref<1x250xf32, #tpu.memory_space<vmem>>, vector<1x250xf32>,
    %c0_14 = arith.constant 0 : index
    %c0_15 = arith.constant 0 : index
    %26 = vector.load %arg12[%c0_14, %c0_15] : memref<1x1xf32, #tpu.memory_space<vmem>>, vector<1x1xf32>
    %cst_16 = arith.constant dense<0xFF800000> : vector<1xf32>
    %27 = vector.multi_reduction <maximumf>, %24, %cst_16 [1] : vector<1x250xf32> to vector<1xf32>
    %28 = vector.shape_cast %27 : vector<1xf32> to vector<1x1xf32>
    %29 = arith.maximumf %26, %28 : vector<1x1xf32>
    %30 = arith.subf %26, %29 : vector<1x1xf32>
    %31 = math.exp %30 : vector<1x1xf32>
    %32 = vector.broadcast %29 : vector<1x1xf32> to vector<1x250xf32>
    %33 = arith.subf %24, %32 : vector<1x250xf32>
    %34 = math.exp %33 : vector<1x250xf32>
    %c0_17 = arith.constant 0 : index
    %c0_18 = arith.constant 0 : index
    %35 = vector.load %arg13[%c0_17, %c0_18] : memref<1x1xf32, #tpu.memory_space<vmem>>, vector<1x1xf32>
    %36 = arith.mulf %31, %35 : vector<1x1xf32>
    %cst_19 = arith.constant dense<0.000000e+00> : vector<1xf32>
    %37 = vector.multi_reduction <add>, %34, %cst_19 [1] : vector<1x250xf32> to vector<1xf32>
    %38 = vector.shape_cast %37 : vector<1xf32> to vector<1x1xf32>
    %39 = arith.addf %36, %38 : vector<1x1xf32>
    %c0_20 = arith.constant 0 : index
    %c0_21 = arith.constant 0 : index
    %40 = vector.load %arg13[%c0_20, %c0_21] : memref<1x1xf32, #tpu.memory_space<vmem>>, vector<1x1xf32>
    tpu.vector_store %arg13[%c0_20, %c0_21], %39 {strides = array<i32>} : memref<1x1xf32, #tpu.memory_space<vmem>>, vector<1x1xf32>,
    %c0_22 = arith.constant 0 : index
    %c0_23 = arith.constant 0 : index
    %41 = vector.load %arg14[%c0_22, %c0_23] : memref<1x128xf32, #tpu.memory_space<vmem>>, vector<1x128xf32>
    %42 = vector.broadcast %31 : vector<1x1xf32> to vector<1x128xf32>
    %43 = arith.mulf %42, %41 : vector<1x128xf32>
    %44 = arith.truncf %34 : vector<1x250xf32> to vector<1x250xbf16>
    %cst_24 = arith.constant dense<0.000000e+00> : vector<1x128xf32>
    %45 = tpu.matmul %44, %4, %cst_24 {dimension_numbers = #tpu.dot_dimension_numbers<[1], [0], [0], [1], [0, 0, 1, 1], [], []>} : vector<1x250xbf16>, vector<250x128xbf16>, vector<1x128xf32> -> vector<1x128xf32>
    %46 = arith.addf %43, %45 : vector<1x128xf32>
    %c0_25 = arith.constant 0 : index
    %c0_26 = arith.constant 0 : index
    %47 = vector.load %arg14[%c0_25, %c0_26] : memref<1x128xf32, #tpu.memory_space<vmem>>, vector<1x128xf32>
    tpu.vector_store %arg14[%c0_25, %c0_26], %46 {strides = array<i32>} : memref<1x128xf32, #tpu.memory_space<vmem>>, vector<1x128xf32>,
    %c0_27 = arith.constant 0 : index
    %c0_28 = arith.constant 0 : index
    %48 = vector.load %arg12[%c0_27, %c0_28] : memref<1x1xf32, #tpu.memory_space<vmem>>, vector<1x1xf32>
    tpu.vector_store %arg12[%c0_27, %c0_28], %29 {strides = array<i32>} : memref<1x1xf32, #tpu.memory_space<vmem>>, vector<1x1xf32>,
    %c0_i32_29 = arith.constant 0 : i32
    %49 = arith.cmpi eq, %arg0, %c0_i32_29 : i32
    %50 = arith.extui %49 : i1 to i32
    %c0_i32_30 = arith.constant 0 : i32
    %51 = arith.cmpi ne, %50, %c0_i32_30 : i32
    scf.if %51 {
      %c0_31 = arith.constant 0 : index
      %c0_32 = arith.constant 0 : index
      %52 = vector.load %arg14[%c0_31, %c0_32] : memref<1x128xf32, #tpu.memory_space<vmem>>, vector<1x128xf32>
      %c0_33 = arith.constant 0 : index
      %c0_34 = arith.constant 0 : index
      %53 = vector.load %arg13[%c0_33, %c0_34] : memref<1x1xf32, #tpu.memory_space<vmem>>, vector<1x1xf32>
      %54 = vector.broadcast %53 : vector<1x1xf32> to vector<1x128xf32>
      %55 = arith.divf %52, %54 : vector<1x128xf32>
      %c0_35 = arith.constant 0 : index
      %c0_36 = arith.constant 0 : index
      %56 = vector.load %arg10[%c0_35, %c0_36] : memref<1x128xf32, #tpu.memory_space<vmem>>, vector<1x128xf32>
      tpu.vector_store %arg10[%c0_35, %c0_36], %55 {strides = array<i32>} : memref<1x128xf32, #tpu.memory_space<vmem>>, vector<1x128xf32>,
      %c0_37 = arith.constant 0 : index
      %c0_38 = arith.constant 0 : index
      %57 = vector.load %arg7[%c0_37, %c0_38] : memref<128x2xf32, #tpu.memory_space<vmem>>, vector<128x2xf32>
      %cst_39 = arith.constant dense<0.000000e+00> : vector<1x2xf32>
      %58 = tpu.matmul %55, %57, %cst_39 {dimension_numbers = #tpu.dot_dimension_numbers<[1], [0], [0], [1], [0, 0, 1, 1], [], []>} : vector<1x128xf32>, vector<128x2xf32>, vector<1x2xf32> -> vector<1x2xf32>
      %c0_40 = arith.constant 0 : index
      %c0_41 = arith.constant 0 : index
      %59 = vector.load %arg8[%c0_40, %c0_41] : memref<1x2xf32, #tpu.memory_space<vmem>>, vector<1x2xf32>
      %60 = arith.addf %58, %59 : vector<1x2xf32>
      %c0_42 = arith.constant 0 : index
      %c0_43 = arith.constant 0 : index
      %61 = vector.load %arg11[%c0_42, %c0_43] : memref<1x2xf32, #tpu.memory_space<vmem>>, vector<1x2xf32>
      tpu.vector_store %arg11[%c0_42, %c0_43], %60 {strides = array<i32>} : memref<1x2xf32, #tpu.memory_space<vmem>>, vector<1x2xf32>,
    } else {
    }
    return
  }
  func.func @transform_0(%arg0: i32, %arg1: memref<1xi32, #tpu.memory_space<smem>>) -> (i32, i32) {
    %c0_i32 = arith.constant 0 : i32
    %c0_i32_0 = arith.constant 0 : i32
    return %arg0, %c0_i32 : i32, i32
  }
  func.func @transform_1(%arg0: i32, %arg1: memref<1xi32, #tpu.memory_space<smem>>) -> (i32, i32) {
    %c0_i32 = arith.constant 0 : i32
    %c0_i32_0 = arith.constant 0 : i32
    %c0_i32_1 = arith.constant 0 : i32
    return %c0_i32, %c0_i32_0 : i32, i32
  }
  func.func @transform_2(%arg0: i32, %arg1: memref<1xi32, #tpu.memory_space<smem>>) -> (i32, i32) {
    %c0_i32 = arith.constant 0 : i32
    %c0_i32_0 = arith.constant 0 : i32
    %c0_i32_1 = arith.constant 0 : i32
    return %c0_i32, %c0_i32_0 : i32, i32
  }
  func.func @transform_3(%arg0: i32, %arg1: memref<1xi32, #tpu.memory_space<smem>>) -> (i32, i32) {
    %c0_i32 = arith.constant 0 : i32
    %c0_i32_0 = arith.constant 0 : i32
    %c0_i32_1 = arith.constant 0 : i32
    return %c0_i32, %c0_i32_0 : i32, i32
  }
  func.func @transform_4(%arg0: i32, %arg1: memref<1xi32, #tpu.memory_space<smem>>) -> (i32, i32) {
    %c0_i32 = arith.constant 0 : i32
    %c0_i32_0 = arith.constant 0 : i32
    %c0_i32_1 = arith.constant 0 : i32
    return %c0_i32, %c0_i32_0 : i32, i32
  }
  func.func @transform_5(%arg0: i32, %arg1: memref<1xi32, #tpu.memory_space<smem>>) -> (i32, i32) {
    %c0_i32 = arith.constant 0 : i32
    %c0_i32_0 = arith.constant 0 : i32
    %c0_i32_1 = arith.constant 0 : i32
    return %c0_i32, %c0_i32_0 : i32, i32
  }
  func.func @transform_6(%arg0: i32, %arg1: memref<1xi32, #tpu.memory_space<smem>>) -> (i32, i32) {
    %c0_i32 = arith.constant 0 : i32
    %c0_i32_0 = arith.constant 0 : i32
    %c0_i32_1 = arith.constant 0 : i32
    return %c0_i32, %c0_i32_0 : i32, i32
  }
  func.func @transform_7(%arg0: i32, %arg1: memref<1xi32, #tpu.memory_space<smem>>) -> (i32, i32) {
    %c0_i32 = arith.constant 0 : i32
    %c0_i32_0 = arith.constant 0 : i32
    return %c0_i32, %arg0 : i32, i32
  }
  func.func @transform_8(%arg0: i32, %arg1: memref<1xi32, #tpu.memory_space<smem>>) -> (i32, i32) {
    %c0_i32 = arith.constant 0 : i32
    %c0_i32_0 = arith.constant 0 : i32
    %c0_i32_1 = arith.constant 0 : i32
    return %c0_i32, %c0_i32_0 : i32, i32
  }
  func.func @transform_9(%arg0: i32, %arg1: memref<1xi32, #tpu.memory_space<smem>>) -> (i32, i32) {
    %c0_i32 = arith.constant 0 : i32
    %c0_i32_0 = arith.constant 0 : i32
    %c0_i32_1 = arith.constant 0 : i32
    return %c0_i32, %c0_i32_0 : i32, i32
  }
}

</mosaic_0001>

<llo_original>
// kernel: _pooled_forward.1
$region0: #{_pooled_forward.1}
  #allocation0 [shape = 'u32[]', space=smem, size = 0x4, offset = 0x4, fixed_abs, tag = 'smem constant byte address 0x4 - core index']
  #allocation1 [shape = 'u32[144,128]{1,0:T(1,128)}', space=vmem, size = 0x12000, scoped, tag = 'internal scratch']
  #allocation2 [shape = 'f32[1,1]{1,0:T(1,128)}', space=vmem, size = 0x200, scoped, tag = 'scratch operand']
  #allocation3 [shape = 'f32[1,1]{1,0:T(1,128)}', space=vmem, size = 0x200, scoped, tag = 'scratch operand']
  #allocation4 [shape = 'f32[1,128]{1,0:T(1,128)}', space=vmem, size = 0x200, scoped, tag = 'scratch operand']
  #allocation5 [shape = 's32[1]{0}', space=sflag, size = 0x4, scoped, tag = 'scoped memory for _pooled_forward.1']
  #allocation6 [shape = 's32[1]{0:T(128)S(6)}', space=smem, size = 0x200, scoped, tag = 'prefetched SMEM operand 0']
  #allocation7 [shape = 'f32[1,1]{1,0:T(1,128)S(1)}', space=vmem, size = 0x200, scoped, tag = 'scoped memory for _pooled_forward.1']
  %s0 = inlined_call_operand.<no memory space> [shape: s32[1], index: 0, kind: input, shape index: {}]
  %s1 = inlined_call_operand.hbm [shape: f32[250,128], index: 1, kind: input, shape index: {}]
  %s2 = inlined_call_operand.vmem [shape: bf16[128,128], index: 2, kind: input, shape index: {}]
  %s3 = inlined_call_operand.vmem [shape: f32[1,128], index: 3, kind: input, shape index: {}]
  %s4 = inlined_call_operand.vmem [shape: bf16[1,64], index: 4, kind: input, shape index: {}]
  %s5 = inlined_call_operand.<no memory space> [shape: f32[1,1], index: 5, kind: input, shape index: {}]
  %s6 = inlined_call_operand.vmem [shape: f32[128,2], index: 6, kind: input, shape index: {}]
  %s7 = inlined_call_operand.vmem [shape: f32[1,2], index: 7, kind: input, shape index: {}]
  %s8 = inlined_call_operand.vmem [shape: f32[1,250], index: 8, kind: output, shape index: {0}]
  %s9 = inlined_call_operand.hbm [shape: f32[1,128], index: 9, kind: output, shape index: {1}]
  %s10 = inlined_call_operand.vmem [shape: f32[1,2], index: 10, kind: output, shape index: {2}]
  %11 = xla_tuple %s8, %s9, %s10
  %s12 = sld [smem:[#allocation0]]
  $region66: #{_pooled_forward.1} parent=0
    _
  %s14 = ssub.s32 1, %s12
  %s15 = scalar_select 0, %s14, %s12
  %16 = sst [smem:[#allocation6]] %s0
  %v17 = vstv %s5
  %18 = vst [vmem:[#allocation7] sm:$0x1] %v17
  $region1: #{_pooled_forward.1} parent=0
    #allocation8 [shape = 'u8[131072]{0}', space=vmem, size = 0x20000, scoped, tag = 'input window, operand 1, single buffered']
    #allocation9 [shape = 's32[1]{0}', space=sflag, size = 0x4, scoped, tag = 'scoped memory for _pooled_forward.1']
    #allocation10 [shape = 's32[1]{0}', space=sflag, size = 0x4, scoped, tag = 'scoped memory for _pooled_forward.1']
    #allocation11 [shape = 'u8[512]{0}', space=vmem, size = 0x400, scoped, tag = 'output window, operand 1, single buffered']
    %19 = vsyncpa [#allocation9], 0
    %20 = vsyncpa [#allocation10], 0
    // Predicated region
    $region2: #{_pooled_forward.1} parent=1 // pred_check
      _
    $region3: #{_pooled_forward.1} parent=1 // pred_check_branch
      %22 = sbr.rel (0) target = $region5
    $region4: #{_pooled_forward.1} parent=1 // pred_region
      %s24 = ssub.s32 4096, 4096
      %25 = vsyncadd [#allocation9], %s24
      %s26 = sshll.u32 [#allocation8], 4
      %s27 = int_to_ptr.vmem [resolvable:$true] %s26
      %32 = dma.hbm_to_vmem [thread:$0]  %s1, 4096, %s27, [#allocation9], 128, 128, 8
    $region5: #{_pooled_forward.1} parent=1 // pred_fallthru
      _
    // Predicated region
    $region6: #{_pooled_forward.1} parent=1 // pred_check
      _
    $region7: #{_pooled_forward.1} parent=1 // pred_check_branch
      %34 = sbr.rel (0) target = $region9
    $region8: #{_pooled_forward.1} parent=1 // pred_region
      _
    $region9: #{_pooled_forward.1} parent=1 // pred_fallthru
      _
    // Predicated region
    $region10: #{_pooled_forward.1} parent=1 // pred_check
      _
    $region11: #{_pooled_forward.1} parent=1 // pred_check_branch
      %36 = sbr.rel (0) target = $region13
    $region12: #{_pooled_forward.1} parent=1 // pred_region
      _
    $region13: #{_pooled_forward.1} parent=1 // pred_fallthru
      _
    // Predicated region
    $region14: #{_pooled_forward.1} parent=1 // pred_check
      _
    $region15: #{_pooled_forward.1} parent=1 // pred_check_branch
      %38 = sbr.rel (0) target = $region17
    $region16: #{_pooled_forward.1} parent=1 // pred_region
      _
    $region17: #{_pooled_forward.1} parent=1 // pred_fallthru
      _
    // Predicated region
    $region18: #{_pooled_forward.1} parent=1 // pred_check
      _
    $region19: #{_pooled_forward.1} parent=1 // pred_check_branch
      %40 = sbr.rel (0) target = $region21
    $region20: #{_pooled_forward.1} parent=1 // pred_region
      _
    $region21: #{_pooled_forward.1} parent=1 // pred_fallthru
      _
    // Predicated region
    $region22: #{_pooled_forward.1} parent=1 // pred_check
      _
    $region23: #{_pooled_forward.1} parent=1 // pred_check_branch
      %42 = sbr.rel (0) target = $region25
    $region24: #{_pooled_forward.1} parent=1 // pred_region
      _
    $region25: #{_pooled_forward.1} parent=1 // pred_fallthru
      _
    // Predicated region
    $region26: #{_pooled_forward.1} parent=1 // pred_check
      _
    $region27: #{_pooled_forward.1} parent=1 // pred_check_branch
      %44 = sbr.rel (0) target = $region29
    $region28: #{_pooled_forward.1} parent=1 // pred_region
      _
    $region29: #{_pooled_forward.1} parent=1 // pred_fallthru
      _
    // Predicated region
    $region30: #{_pooled_forward.1} parent=1 // pred_check
      _
    $region31: #{_pooled_forward.1} parent=1 // pred_check_branch
      %46 = sbr.rel (0) target = $region33
    $region32: #{_pooled_forward.1} parent=1 // pred_region
      %47 = dma.done [#allocation9], 4096
    $region33: #{_pooled_forward.1} parent=1 // pred_fallthru
      _
    %p49 = scmp.eq.s32.totalorder 0, 0
    // Predicated region
    $region34: #{_pooled_forward.1} parent=1 // pred_check
      %p50 = pneg %p49
    $region35: #{_pooled_forward.1} parent=1 // pred_check_branch
      %52 = sbr.rel (%p50) target = $region37
    $region36: #{_pooled_forward.1} parent=1 // pred_region
      %vm53 = vcmask 0
      %54 = vst.msk [vmem:[#allocation2] sm:$0x1] %vm53, -inf
      %55 = vst.msk [vmem:[#allocation3] sm:$0x1] %vm53, 0.0
      %56 = vst [vmem:[#allocation4] sm:$0x1] 0.0
    $region37: #{_pooled_forward.1} parent=1 // pred_fallthru
      _
    %v57 = vld [vmem:[#allocation8] sm:$0xff]
    %v58 = vld [vmem:[#allocation8 + $0x8] sm:$0xff]
    %v59 = vld [vmem:[#allocation8 + $0x10] sm:$0xff]
    %v60 = vld [vmem:[#allocation8 + $0x18] sm:$0xff]
    %v61 = vld [vmem:[#allocation8 + $0x20] sm:$0xff]
    %v62 = vld [vmem:[#allocation8 + $0x28] sm:$0xff]
    %v63 = vld [vmem:[#allocation8 + $0x30] sm:$0xff]
    %v64 = vld [vmem:[#allocation8 + $0x38] sm:$0xff]
    %v65 = vld [vmem:[#allocation8 + $0x40] sm:$0xff]
    %v66 = vld [vmem:[#allocation8 + $0x48] sm:$0xff]
    %v67 = vld [vmem:[#allocation8 + $0x50] sm:$0xff]
    %v68 = vld [vmem:[#allocation8 + $0x58] sm:$0xff]
    %v69 = vld [vmem:[#allocation8 + $0x60] sm:$0xff]
    %v70 = vld [vmem:[#allocation8 + $0x68] sm:$0xff]
    %v71 = vld [vmem:[#allocation8 + $0x70] sm:$0xff]
    %v72 = vld [vmem:[#allocation8 + $0x78] sm:$0xff]
    %v73 = vld [vmem:[#allocation8 + $0x80] sm:$0xff]
    %v74 = vld [vmem:[#allocation8 + $0x88] sm:$0xff]
    %v75 = vld [vmem:[#allocation8 + $0x90] sm:$0xff]
    %v76 = vld [vmem:[#allocation8 + $0x98] sm:$0xff]
    %v77 = vld [vmem:[#allocation8 + $0xa0] sm:$0xff]
    %v78 = vld [vmem:[#allocation8 + $0xa8] sm:$0xff]
    %v79 = vld [vmem:[#allocation8 + $0xb0] sm:$0xff]
    %v80 = vld [vmem:[#allocation8 + $0xb8] sm:$0xff]
    %v81 = vld [vmem:[#allocation8 + $0xc0] sm:$0xff]
    %v82 = vld [vmem:[#allocation8 + $0xc8] sm:$0xff]
    %v83 = vld [vmem:[#allocation8 + $0xd0] sm:$0xff]
    %v84 = vld [vmem:[#allocation8 + $0xd8] sm:$0xff]
    %v85 = vld [vmem:[#allocation8 + $0xe0] sm:$0xff]
    %v86 = vld [vmem:[#allocation8 + $0xe8] sm:$0xff]
    %v87 = vld [vmem:[#allocation8 + $0xf0] sm:$0xff]
    %v88 = vld [vmem:[#allocation8 + $0xf8] sm:$0x3]
    %v89 = vpack.c.bf16 %v58, %v57
    %v90 = vpack.c.bf16 %v60, %v59
    %v91 = vpack.c.bf16 %v62, %v61
    %v92 = vpack.c.bf16 %v64, %v63
    %v93 = vpack.c.bf16 %v66, %v65
    %v94 = vpack.c.bf16 %v68, %v67
    %v95 = vpack.c.bf16 %v70, %v69
    %v96 = vpack.c.bf16 %v72, %v71
    %v97 = vpack.c.bf16 %v74, %v73
    %v98 = vpack.c.bf16 %v76, %v75
    %v99 = vpack.c.bf16 %v78, %v77
    %v100 = vpack.c.bf16 %v80, %v79
    %v101 = vpack.c.bf16 %v82, %v81
    %v102 = vpack.c.bf16 %v84, %v83
    %v103 = vpack.c.bf16 %v86, %v85
    %v104 = vpack.c.bf16 %v88, %v87
    %v105 = vld [vmem:[%s2] sm:$0xf]
    %v106 = vld [vmem:[%s2 + $0x4] sm:$0xf]
    %v107 = vld [vmem:[%s2 + $0x8] sm:$0xf]
    %v108 = vld [vmem:[%s2 + $0xc] sm:$0xf]
    %v109 = vld [vmem:[%s2 + $0x10] sm:$0xf]
    %v110 = vld [vmem:[%s2 + $0x14] sm:$0xf]
    %v111 = vld [vmem:[%s2 + $0x18] sm:$0xf]
    %v112 = vld [vmem:[%s2 + $0x1c] sm:$0xf]
    %v113 = vld [vmem:[%s2 + $0x20] sm:$0xf]
    %v114 = vld [vmem:[%s2 + $0x24] sm:$0xf]
    %v115 = vld [vmem:[%s2 + $0x28] sm:$0xf]
    %v116 = vld [vmem:[%s2 + $0x2c] sm:$0xf]
    %v117 = vld [vmem:[%s2 + $0x30] sm:$0xf]
    %v118 = vld [vmem:[%s2 + $0x34] sm:$0xf]
    %v119 = vld [vmem:[%s2 + $0x38] sm:$0xf]
    %v120 = vld [vmem:[%s2 + $0x3c] sm:$0xf]
    %v121 = vld [vmem:[%s3] sm:$0x1]
    %v123 = vlaneseq
    %v124 = vshrl.u32 %v123, 7
    %v125 = vsub.s32 0, %v124
    %v126 = vrot.slane %v121, %v125
    %v144 = vunpack.c.l.b16 %v105
    %v145 = vunpack.c.l.b16 %v106
    %v146 = vunpack.c.l.b16 %v107
    %v147 = vunpack.c.l.b16 %v108
    %v148 = vunpack.c.l.b16 %v109
    %v149 = vunpack.c.l.b16 %v110
    %v150 = vunpack.c.l.b16 %v111
    %v151 = vunpack.c.l.b16 %v112
    %v152 = vunpack.c.l.b16 %v113
    %v153 = vunpack.c.l.b16 %v114
    %v154 = vunpack.c.l.b16 %v115
    %v155 = vunpack.c.l.b16 %v116
    %v156 = vunpack.c.l.b16 %v117
    %v157 = vunpack.c.l.b16 %v118
    %v158 = vunpack.c.l.b16 %v119
    %v159 = vunpack.c.l.b16 %v120
    %v160 = vpack.c.b16 %v145, %v144
    %v161 = vpack.c.b16 %v147, %v146
    %v162 = vpack.c.b16 %v149, %v148
    %v163 = vpack.c.b16 %v151, %v150
    %v164 = vpack.c.b16 %v153, %v152
    %v165 = vpack.c.b16 %v155, %v154
    %v166 = vpack.c.b16 %v157, %v156
    %v167 = vpack.c.b16 %v159, %v158
    %176 = vmatprep.subr.bf16.mxu0 0
    %177 = vmatpush1.bf16.msra.mxu0 %v167
    %178 = vmatprep.subr.bf16.mxu0 0
    %179 = vmatpush1.bf16.msra.mxu0 %v166
    %180 = vmatprep.subr.bf16.mxu0 0
    %181 = vmatpush1.bf16.msra.mxu0 %v165
    %182 = vmatprep.subr.bf16.mxu0 0
    %183 = vmatpush1.bf16.msra.mxu0 %v164
    %184 = vmatprep.subr.bf16.mxu0 0
    %185 = vmatpush1.bf16.msra.mxu0 %v163
    %186 = vmatprep.subr.bf16.mxu0 0
    %187 = vmatpush1.bf16.msra.mxu0 %v162
    %188 = vmatprep.subr.bf16.mxu0 0
    %189 = vmatpush1.bf16.msra.mxu0 %v161
    %190 = vmatprep.subr.bf16.mxu0 0
    %191 = vmatpush1.bf16.msra.mxu0 %v160
    %192 = vmatprep.subr.bf16.mxu0 0
    %193 = vmatpush2.bf16.msra.mxu0 0
    %194 = vmatprep.subr.bf16.mxu0 0
    %195 = vmatpush2.bf16.msra.mxu0 0
    %196 = vmatprep.subr.bf16.mxu0 0
    %197 = vmatpush2.bf16.msra.mxu0 0
    %198 = vmatprep.subr.bf16.mxu0 0
    %199 = vmatpush2.bf16.msra.mxu0 0
    %200 = vmatprep.subr.bf16.mxu0 0
    %201 = vmatpush2.bf16.msra.mxu0 0
    %202 = vmatprep.subr.bf16.mxu0 0
    %203 = vmatpush2.bf16.msra.mxu0 0
    %204 = vmatprep.subr.bf16.mxu0 0
    %205 = vmatpush2.bf16.msra.mxu0 0
    %206 = vmatprep.subr.bf16.mxu0 0
    %207 = vmatpush2.bf16.msra.mxu0 0
    %208 = vmatprep.mubr.bf16.mxu0 0
    %209 = vmatmul.mubr.bf16.gmra.mxu0 %v89
    %v210 = vpop.f32.mrf.mxu0
    %v211 = vadd.f32 %v126, %v210
    %v212 = vpop.f32.mrf.mxu0
    %v213 = vpop.f32.mrf.mxu0
    %v214 = vadd.f32 %v126, %v213
    %v215 = vpop.f32.mrf.mxu0
    %216 = vmatprep.mubr.bf16.mxu0 0
    %217 = vmatmul.mubr.bf16.gmra.mxu0 %v90
    %v218 = vpop.f32.mrf.mxu0
    %v219 = vadd.f32 %v126, %v218
    %v220 = vpop.f32.mrf.mxu0
    %v221 = vpop.f32.mrf.mxu0
    %v222 = vadd.f32 %v126, %v221
    %v223 = vpop.f32.mrf.mxu0
    %224 = vmatprep.mubr.bf16.mxu0 0
    %225 = vmatmul.mubr.bf16.gmra.mxu0 %v91
    %v226 = vpop.f32.mrf.mxu0
    %v227 = vadd.f32 %v126, %v226
    %v228 = vpop.f32.mrf.mxu0
    %v229 = vpop.f32.mrf.mxu0
    %v230 = vadd.f32 %v126, %v229
    %v231 = vpop.f32.mrf.mxu0
    %232 = vmatprep.mubr.bf16.mxu0 0
    %233 = vmatmul.mubr.bf16.gmra.mxu0 %v92
    %v234 = vpop.f32.mrf.mxu0
    %v235 = vadd.f32 %v126, %v234
    %v236 = vpop.f32.mrf.mxu0
    %v237 = vpop.f32.mrf.mxu0
    %v238 = vadd.f32 %v126, %v237
    %v239 = vpop.f32.mrf.mxu0
    %240 = vmatprep.mubr.bf16.mxu0 0
    %241 = vmatmul.mubr.bf16.gmra.mxu0 %v93
    %v242 = vpop.f32.mrf.mxu0
    %v243 = vadd.f32 %v126, %v242
    %v244 = vpop.f32.mrf.mxu0
    %v245 = vpop.f32.mrf.mxu0
    %v246 = vadd.f32 %v126, %v245
    %v247 = vpop.f32.mrf.mxu0
    %248 = vmatprep.mubr.bf16.mxu0 0
    %249 = vmatmul.mubr.bf16.gmra.mxu0 %v94
    %v250 = vpop.f32.mrf.mxu0
    %v251 = vadd.f32 %v126, %v250
    %v252 = vpop.f32.mrf.mxu0
    %v253 = vpop.f32.mrf.mxu0
    %v254 = vadd.f32 %v126, %v253
    %v255 = vpop.f32.mrf.mxu0
    %256 = vmatprep.mubr.bf16.mxu0 0
    %257 = vmatmul.mubr.bf16.gmra.mxu0 %v95
    %v258 = vpop.f32.mrf.mxu0
    %v259 = vadd.f32 %v126, %v258
    %v260 = vpop.f32.mrf.mxu0
    %v261 = vpop.f32.mrf.mxu0
    %v262 = vadd.f32 %v126, %v261
    %v263 = vpop.f32.mrf.mxu0
    %264 = vmatprep.mubr.bf16.mxu0 0
    %265 = vmatmul.mubr.bf16.gmra.mxu0 %v96
    %v266 = vpop.f32.mrf.mxu0
    %v267 = vadd.f32 %v126, %v266
    %v268 = vpop.f32.mrf.mxu0
    %v269 = vpop.f32.mrf.mxu0
    %v270 = vadd.f32 %v126, %v269
    %v271 = vpop.f32.mrf.mxu0
    %272 = vmatprep.mubr.bf16.mxu0 0
    %273 = vmatmul.mubr.bf16.gmra.mxu0 %v97
    %v274 = vpop.f32.mrf.mxu0
    %v275 = vadd.f32 %v126, %v274
    %v276 = vpop.f32.mrf.mxu0
    %v277 = vpop.f32.mrf.mxu0
    %v278 = vadd.f32 %v126, %v277
    %v279 = vpop.f32.mrf.mxu0
    %280 = vmatprep.mubr.bf16.mxu0 0
    %281 = vmatmul.mubr.bf16.gmra.mxu0 %v98
    %v282 = vpop.f32.mrf.mxu0
    %v283 = vadd.f32 %v126, %v282
    %v284 = vpop.f32.mrf.mxu0
    %v285 = vpop.f32.mrf.mxu0
    %v286 = vadd.f32 %v126, %v285
    %v287 = vpop.f32.mrf.mxu0
    %288 = vmatprep.mubr.bf16.mxu0 0
    %289 = vmatmul.mubr.bf16.gmra.mxu0 %v99
    %v290 = vpop.f32.mrf.mxu0
    %v291 = vadd.f32 %v126, %v290
    %v292 = vpop.f32.mrf.mxu0
    %v293 = vpop.f32.mrf.mxu0
    %v294 = vadd.f32 %v126, %v293
    %v295 = vpop.f32.mrf.mxu0
    %296 = vmatprep.mubr.bf16.mxu0 0
    %297 = vmatmul.mubr.bf16.gmra.mxu0 %v100
    %v298 = vpop.f32.mrf.mxu0
    %v299 = vadd.f32 %v126, %v298
    %v300 = vpop.f32.mrf.mxu0
    %v301 = vpop.f32.mrf.mxu0
    %v302 = vadd.f32 %v126, %v301
    %v303 = vpop.f32.mrf.mxu0
    %304 = vmatprep.mubr.bf16.mxu0 0
    %305 = vmatmul.mubr.bf16.gmra.mxu0 %v101
    %v306 = vpop.f32.mrf.mxu0
    %v307 = vadd.f32 %v126, %v306
    %v308 = vpop.f32.mrf.mxu0
    %v309 = vpop.f32.mrf.mxu0
    %v310 = vadd.f32 %v126, %v309
    %v311 = vpop.f32.mrf.mxu0
    %312 = vmatprep.mubr.bf16.mxu0 0
    %313 = vmatmul.mubr.bf16.gmra.mxu0 %v102
    %v314 = vpop.f32.mrf.mxu0
    %v315 = vadd.f32 %v126, %v314
    %v316 = vpop.f32.mrf.mxu0
    %v317 = vpop.f32.mrf.mxu0
    %v318 = vadd.f32 %v126, %v317
    %v319 = vpop.f32.mrf.mxu0
    %320 = vmatprep.mubr.bf16.mxu0 0
    %321 = vmatmul.mubr.bf16.gmra.mxu0 %v103
    %v322 = vpop.f32.mrf.mxu0
    %v323 = vadd.f32 %v126, %v322
    %v324 = vpop.f32.mrf.mxu0
    %v325 = vpop.f32.mrf.mxu0
    %v326 = vadd.f32 %v126, %v325
    %v327 = vpop.f32.mrf.mxu0
    %328 = vmatprep.mubr.bf16.mxu0 0
    %329 = vmatmul.mubr.bf16.gmra.mxu0 %v104
    %v330 = vpop.f32.mrf.mxu0
    %v331 = vadd.f32 %v126, %v330
    %v332 = vpop.f32.mrf.mxu0
    %v333 = vpop.f32.mrf.mxu0
    %v334 = vadd.f32 %v126, %v333
    %v335 = vpop.f32.mrf.mxu0
    %336 = vdwg.mxu0
    %v337 = vtanh.pop %v211
    %v338 = vtanh.pop %v214
    %v339 = vtanh.pop %v219
    %v340 = vtanh.pop %v222
    %v341 = vtanh.pop %v227
    %v342 = vtanh.pop %v230
    %v343 = vtanh.pop %v235
    %v344 = vtanh.pop %v238
    %v345 = vtanh.pop %v243
    %v346 = vtanh.pop %v246
    %v347 = vtanh.pop %v251
    %v348 = vtanh.pop %v254
    %v349 = vtanh.pop %v259
    %v350 = vtanh.pop %v262
    %v351 = vtanh.pop %v267
    %v352 = vtanh.pop %v270
    %v353 = vtanh.pop %v275
    %v354 = vtanh.pop %v278
    %v355 = vtanh.pop %v283
    %v356 = vtanh.pop %v286
    %v357 = vtanh.pop %v291
    %v358 = vtanh.pop %v294
    %v359 = vtanh.pop %v299
    %v360 = vtanh.pop %v302
    %v361 = vtanh.pop %v307
    %v362 = vtanh.pop %v310
    %v363 = vtanh.pop %v315
    %v364 = vtanh.pop %v318
    %v365 = vtanh.pop %v323
    %v366 = vtanh.pop %v326
    %v367 = vtanh.pop %v331
    %v368 = vtanh.pop %v334
    %v369 = vxor.u32 %v211, 2147483648
    %v370 = vxor.u32 %v214, 2147483648
    %v371 = vxor.u32 %v219, 2147483648
    %v372 = vxor.u32 %v222, 2147483648
    %v373 = vxor.u32 %v227, 2147483648
    %v374 = vxor.u32 %v230, 2147483648
    %v375 = vxor.u32 %v235, 2147483648
    %v376 = vxor.u32 %v238, 2147483648
    %v377 = vxor.u32 %v243, 2147483648
    %v378 = vxor.u32 %v246, 2147483648
    %v379 = vxor.u32 %v251, 2147483648
    %v380 = vxor.u32 %v254, 2147483648
    %v381 = vxor.u32 %v259, 2147483648
    %v382 = vxor.u32 %v262, 2147483648
    %v383 = vxor.u32 %v267, 2147483648
    %v384 = vxor.u32 %v270, 2147483648
    %v385 = vxor.u32 %v275, 2147483648
    %v386 = vxor.u32 %v278, 2147483648
    %v387 = vxor.u32 %v283, 2147483648
    %v388 = vxor.u32 %v286, 2147483648
    %v389 = vxor.u32 %v291, 2147483648
    %v390 = vxor.u32 %v294, 2147483648
    %v391 = vxor.u32 %v299, 2147483648
    %v392 = vxor.u32 %v302, 2147483648
    %v393 = vxor.u32 %v307, 2147483648
    %v394 = vxor.u32 %v310, 2147483648
    %v395 = vxor.u32 %v315, 2147483648
    %v396 = vxor.u32 %v318, 2147483648
    %v397 = vxor.u32 %v323, 2147483648
    %v398 = vxor.u32 %v326, 2147483648
    %v399 = vxor.u32 %v331, 2147483648
    %v400 = vxor.u32 %v334, 2147483648
    %v401 = vmul.f32 %v369, 1.442695
    %v402 = vpow.pop %v401
    %v403 = vmul.f32 %v370, 1.442695
    %v404 = vpow.pop %v403
    %v405 = vmul.f32 %v371, 1.442695
    %v406 = vpow.pop %v405
    %v407 = vmul.f32 %v372, 1.442695
    %v408 = vpow.pop %v407
    %v409 = vmul.f32 %v373, 1.442695
    %v410 = vpow.pop %v409
    %v411 = vmul.f32 %v374, 1.442695
    %v412 = vpow.pop %v411
    %v413 = vmul.f32 %v375, 1.442695
    %v414 = vpow.pop %v413
    %v415 = vmul.f32 %v376, 1.442695
    %v416 = vpow.pop %v415
    %v417 = vmul.f32 %v377, 1.442695
    %v418 = vpow.pop %v417
    %v419 = vmul.f32 %v378, 1.442695
    %v420 = vpow.pop %v419
    %v421 = vmul.f32 %v379, 1.442695
    %v422 = vpow.pop %v421
    %v423 = vmul.f32 %v380, 1.442695
    %v424 = vpow.pop %v423
    %v425 = vmul.f32 %v381, 1.442695
    %v426 = vpow.pop %v425
    %v427 = vmul.f32 %v382, 1.442695
    %v428 = vpow.pop %v427
    %v429 = vmul.f32 %v383, 1.442695
    %v430 = vpow.pop %v429
    %v431 = vmul.f32 %v384, 1.442695
    %v432 = vpow.pop %v431
    %v433 = vmul.f32 %v385, 1.442695
    %v434 = vpow.pop %v433
    %v435 = vmul.f32 %v386, 1.442695
    %v436 = vpow.pop %v435
    %v437 = vmul.f32 %v387, 1.442695
    %v438 = vpow.pop %v437
    %v439 = vmul.f32 %v388, 1.442695
    %v440 = vpow.pop %v439
    %v441 = vmul.f32 %v389, 1.442695
    %v442 = vpow.pop %v441
    %v443 = vmul.f32 %v390, 1.442695
    %v444 = vpow.pop %v443
    %v445 = vmul.f32 %v391, 1.442695
    %v446 = vpow.pop %v445
    %v447 = vmul.f32 %v392, 1.442695
    %v448 = vpow.pop %v447
    %v449 = vmul.f32 %v393, 1.442695
    %v450 = vpow.pop %v449
    %v451 = vmul.f32 %v394, 1.442695
    %v452 = vpow.pop %v451
    %v453 = vmul.f32 %v395, 1.442695
    %v454 = vpow.pop %v453
    %v455 = vmul.f32 %v396, 1.442695
    %v456 = vpow.pop %v455
    %v457 = vmul.f32 %v397, 1.442695
    %v458 = vpow.pop %v457
    %v459 = vmul.f32 %v398, 1.442695
    %v460 = vpow.pop %v459
    %v461 = vmul.f32 %v399, 1.442695
    %v462 = vpow.pop %v461
    %v463 = vmul.f32 %v400, 1.442695
    %v464 = vpow.pop %v463
    %v465 = vadd.f32 %v402, 1.0
    %v466 = vadd.f32 %v404, 1.0
    %v467 = vadd.f32 %v406, 1.0
    %v468 = vadd.f32 %v408, 1.0
    %v469 = vadd.f32 %v410, 1.0
    %v470 = vadd.f32 %v412, 1.0
    %v471 = vadd.f32 %v414, 1.0
    %v472 = vadd.f32 %v416, 1.0
    %v473 = vadd.f32 %v418, 1.0
    %v474 = vadd.f32 %v420, 1.0
    %v475 = vadd.f32 %v422, 1.0
    %v476 = vadd.f32 %v424, 1.0
    %v477 = vadd.f32 %v426, 1.0
    %v478 = vadd.f32 %v428, 1.0
    %v479 = vadd.f32 %v430, 1.0
    %v480 = vadd.f32 %v432, 1.0
    %v481 = vadd.f32 %v434, 1.0
    %v482 = vadd.f32 %v436, 1.0
    %v483 = vadd.f32 %v438, 1.0
    %v484 = vadd.f32 %v440, 1.0
    %v485 = vadd.f32 %v442, 1.0
    %v486 = vadd.f32 %v444, 1.0
    %v487 = vadd.f32 %v446, 1.0
    %v488 = vadd.f32 %v448, 1.0
    %v489 = vadd.f32 %v450, 1.0
    %v490 = vadd.f32 %v452, 1.0
    %v491 = vadd.f32 %v454, 1.0
    %v492 = vadd.f32 %v456, 1.0
    %v493 = vadd.f32 %v458, 1.0
    %v494 = vadd.f32 %v460, 1.0
    %v495 = vadd.f32 %v462, 1.0
    %v496 = vadd.f32 %v464, 1.0
    %v497 = vrcp.pop %v465
    %v498 = vmul.f32 1.0, %v497
    %v499 = vrcp.pop %v466
    %v500 = vmul.f32 1.0, %v499
    %v501 = vrcp.pop %v467
    %v502 = vmul.f32 1.0, %v501
    %v503 = vrcp.pop %v468
    %v504 = vmul.f32 1.0, %v503
    %v505 = vrcp.pop %v469
    %v506 = vmul.f32 1.0, %v505
    %v507 = vrcp.pop %v470
    %v508 = vmul.f32 1.0, %v507
    %v509 = vrcp.pop %v471
    %v510 = vmul.f32 1.0, %v509
    %v511 = vrcp.pop %v472
    %v512 = vmul.f32 1.0, %v511
    %v513 = vrcp.pop %v473
    %v514 = vmul.f32 1.0, %v513
    %v515 = vrcp.pop %v474
    %v516 = vmul.f32 1.0, %v515
    %v517 = vrcp.pop %v475
    %v518 = vmul.f32 1.0, %v517
    %v519 = vrcp.pop %v476
    %v520 = vmul.f32 1.0, %v519
    %v521 = vrcp.pop %v477
    %v522 = vmul.f32 1.0, %v521
    %v523 = vrcp.pop %v478
    %v524 = vmul.f32 1.0, %v523
    %v525 = vrcp.pop %v479
    %v526 = vmul.f32 1.0, %v525
    %v527 = vrcp.pop %v480
    %v528 = vmul.f32 1.0, %v527
    %v529 = vrcp.pop %v481
    %v530 = vmul.f32 1.0, %v529
    %v531 = vrcp.pop %v482
    %v532 = vmul.f32 1.0, %v531
    %v533 = vrcp.pop %v483
    %v534 = vmul.f32 1.0, %v533
    %v535 = vrcp.pop %v484
    %v536 = vmul.f32 1.0, %v535
    %v537 = vrcp.pop %v485
    %v538 = vmul.f32 1.0, %v537
    %v539 = vrcp.pop %v486
    %v540 = vmul.f32 1.0, %v539
    %v541 = vrcp.pop %v487
    %v542 = vmul.f32 1.0, %v541
    %v543 = vrcp.pop %v488
    %v544 = vmul.f32 1.0, %v543
    %v545 = vrcp.pop %v489
    %v546 = vmul.f32 1.0, %v545
    %v547 = vrcp.pop %v490
    %v548 = vmul.f32 1.0, %v547
    %v549 = vrcp.pop %v491
    %v550 = vmul.f32 1.0, %v549
    %v551 = vrcp.pop %v492
    %v552 = vmul.f32 1.0, %v551
    %v553 = vrcp.pop %v493
    %v554 = vmul.f32 1.0, %v553
    %v555 = vrcp.pop %v494
    %v556 = vmul.f32 1.0, %v555
    %v557 = vrcp.pop %v495
    %v558 = vmul.f32 1.0, %v557
    %v559 = vrcp.pop %v496
    %v560 = vmul.f32 1.0, %v559
    %593 = vrot.lane.b32.xlu0 %v498, 64
    %v594 = vpop.permute.xlu0 %593
    %595 = vrot.lane.b32.xlu0 %v500, 64
    %v596 = vpop.permute.xlu0 %595
    %597 = vrot.lane.b32.xlu0 %v502, 64
    %v598 = vpop.permute.xlu0 %597
    %599 = vrot.lane.b32.xlu0 %v504, 64
    %v600 = vpop.permute.xlu0 %599
    %601 = vrot.lane.b32.xlu0 %v506, 64
    %v602 = vpop.permute.xlu0 %601
    %603 = vrot.lane.b32.xlu0 %v508, 64
    %v604 = vpop.permute.xlu0 %603
    %605 = vrot.lane.b32.xlu0 %v510, 64
    %v606 = vpop.permute.xlu0 %605
    %607 = vrot.lane.b32.xlu0 %v512, 64
    %v608 = vpop.permute.xlu0 %607
    %609 = vrot.lane.b32.xlu0 %v514, 64
    %v610 = vpop.permute.xlu0 %609
    %611 = vrot.lane.b32.xlu0 %v516, 64
    %v612 = vpop.permute.xlu0 %611
    %613 = vrot.lane.b32.xlu0 %v518, 64
    %v614 = vpop.permute.xlu0 %613
    %615 = vrot.lane.b32.xlu0 %v520, 64
    %v616 = vpop.permute.xlu0 %615
    %617 = vrot.lane.b32.xlu0 %v522, 64
    %v618 = vpop.permute.xlu0 %617
    %619 = vrot.lane.b32.xlu0 %v524, 64
    %v620 = vpop.permute.xlu0 %619
    %621 = vrot.lane.b32.xlu0 %v526, 64
    %v622 = vpop.permute.xlu0 %621
    %623 = vrot.lane.b32.xlu0 %v528, 64
    %v624 = vpop.permute.xlu0 %623
    %625 = vrot.lane.b32.xlu0 %v530, 64
    %v626 = vpop.permute.xlu0 %625
    %627 = vrot.lane.b32.xlu0 %v532, 64
    %v628 = vpop.permute.xlu0 %627
    %629 = vrot.lane.b32.xlu0 %v534, 64
    %v630 = vpop.permute.xlu0 %629
    %631 = vrot.lane.b32.xlu0 %v536, 64
    %v632 = vpop.permute.xlu0 %631
    %633 = vrot.lane.b32.xlu0 %v538, 64
    %v634 = vpop.permute.xlu0 %633
    %635 = vrot.lane.b32.xlu0 %v540, 64
    %v636 = vpop.permute.xlu0 %635
    %637 = vrot.lane.b32.xlu0 %v542, 64
    %v638 = vpop.permute.xlu0 %637
    %639 = vrot.lane.b32.xlu0 %v544, 64
    %v640 = vpop.permute.xlu0 %639
    %641 = vrot.lane.b32.xlu0 %v546, 64
    %v642 = vpop.permute.xlu0 %641
    %643 = vrot.lane.b32.xlu0 %v548, 64
    %v644 = vpop.permute.xlu0 %643
    %645 = vrot.lane.b32.xlu0 %v550, 64
    %v646 = vpop.permute.xlu0 %645
    %647 = vrot.lane.b32.xlu0 %v552, 64
    %v648 = vpop.permute.xlu0 %647
    %649 = vrot.lane.b32.xlu0 %v554, 64
    %v650 = vpop.permute.xlu0 %649
    %651 = vrot.lane.b32.xlu0 %v556, 64
    %v652 = vpop.permute.xlu0 %651
    %653 = vrot.lane.b32.xlu0 %v558, 64
    %v654 = vpop.permute.xlu0 %653
    %655 = vrot.lane.b32.xlu0 %v560, 64
    %v656 = vpop.permute.xlu0 %655
    %v689 = vmul.f32 %v337, %v594
    %v690 = vmul.f32 %v338, %v596
    %v691 = vmul.f32 %v339, %v598
    %v692 = vmul.f32 %v340, %v600
    %v693 = vmul.f32 %v341, %v602
    %v694 = vmul.f32 %v342, %v604
    %v695 = vmul.f32 %v343, %v606
    %v696 = vmul.f32 %v344, %v608
    %v697 = vmul.f32 %v345, %v610
    %v698 = vmul.f32 %v346, %v612
    %v699 = vmul.f32 %v347, %v614
    %v700 = vmul.f32 %v348, %v616
    %v701 = vmul.f32 %v349, %v618
    %v702 = vmul.f32 %v350, %v620
    %v703 = vmul.f32 %v351, %v622
    %v704 = vmul.f32 %v352, %v624
    %v705 = vmul.f32 %v353, %v626
    %v706 = vmul.f32 %v354, %v628
    %v707 = vmul.f32 %v355, %v630
    %v708 = vmul.f32 %v356, %v632
    %v709 = vmul.f32 %v357, %v634
    %v710 = vmul.f32 %v358, %v636
    %v711 = vmul.f32 %v359, %v638
    %v712 = vmul.f32 %v360, %v640
    %v713 = vmul.f32 %v361, %v642
    %v714 = vmul.f32 %v362, %v644
    %v715 = vmul.f32 %v363, %v646
    %v716 = vmul.f32 %v364, %v648
    %v717 = vmul.f32 %v365, %v650
    %v718 = vmul.f32 %v366, %v652
    %v719 = vmul.f32 %v367, %v654
    %v720 = vmul.f32 %v368, %v656
    %v721 = vpack.c.bf16 %v690, %v689
    %v722 = vpack.c.bf16 %v692, %v691
    %v723 = vpack.c.bf16 %v694, %v693
    %v724 = vpack.c.bf16 %v696, %v695
    %v725 = vpack.c.bf16 %v698, %v697
    %v726 = vpack.c.bf16 %v700, %v699
    %v727 = vpack.c.bf16 %v702, %v701
    %v728 = vpack.c.bf16 %v704, %v703
    %v729 = vpack.c.bf16 %v706, %v705
    %v730 = vpack.c.bf16 %v708, %v707
    %v731 = vpack.c.bf16 %v710, %v709
    %v732 = vpack.c.bf16 %v712, %v711
    %v733 = vpack.c.bf16 %v714, %v713
    %v734 = vpack.c.bf16 %v716, %v715
    %v735 = vpack.c.bf16 %v718, %v717
    %v736 = vpack.c.bf16 %v720, %v719
    %v737 = vld [vmem:[%s4] sm:$0x1]
    %v738 = vld [vmem:[#allocation7] sm:$0x1]
    %740 = vset.pattern.permute.xlu0 0
    %741 = vperm.xlu0 %740, %v738
    %v742 = vpop.permute.xlu0 %741
    %v744 = vlaneseq
    %v745 = vshrl.u32 %v744, 7
    %v746 = vsub.s32 0, %v745
    %v747 = vrot.slane %v742, %v746
    %vm748 = vcmask 523264
    %v750 = vsel %vm748, %v737, 0
    %v753 = vsel %vm748, %v721, 0
    %v756 = vsel %vm748, %v722, 0
    %v759 = vsel %vm748, %v723, 0
    %v762 = vsel %vm748, %v724, 0
    %v765 = vsel %vm748, %v725, 0
    %v768 = vsel %vm748, %v726, 0
    %v771 = vsel %vm748, %v727, 0
    %v774 = vsel %vm748, %v728, 0
    %v777 = vsel %vm748, %v729, 0
    %v780 = vsel %vm748, %v730, 0
    %v783 = vsel %vm748, %v731, 0
    %v786 = vsel %vm748, %v732, 0
    %v789 = vsel %vm748, %v733, 0
    %v792 = vsel %vm748, %v734, 0
    %v795 = vsel %vm748, %v735, 0
    %v798 = vsel %vm748, %v736, 0
    %800 = vmatprep.subr.bf16.mxu0 0
    %801 = vmatpush1.bf16.xpose.msra.mxu0 %v774
    %802 = vmatprep.subr.bf16.mxu0 0
    %803 = vmatpush1.bf16.xpose.msra.mxu0 %v771
    %804 = vmatprep.subr.bf16.mxu0 0
    %805 = vmatpush1.bf16.xpose.msra.mxu0 %v768
    %806 = vmatprep.subr.bf16.mxu0 0
    %807 = vmatpush1.bf16.xpose.msra.mxu0 %v765
    %808 = vmatprep.subr.bf16.mxu0 0
    %809 = vmatpush1.bf16.xpose.msra.mxu0 %v762
    %810 = vmatprep.subr.bf16.mxu0 0
    %811 = vmatpush1.bf16.xpose.msra.mxu0 %v759
    %812 = vmatprep.subr.bf16.mxu0 0
    %813 = vmatpush1.bf16.xpose.msra.mxu0 %v756
    %814 = vmatprep.subr.bf16.mxu0 0
    %815 = vmatpush1.bf16.xpose.msra.mxu0 %v753
    %816 = vmatprep.subr.bf16.mxu0 0
    %817 = vmatpush2.bf16.xpose.msra.mxu0 %v798
    %818 = vmatprep.subr.bf16.mxu0 0
    %819 = vmatpush2.bf16.xpose.msra.mxu0 %v795
    %820 = vmatprep.subr.bf16.mxu0 0
    %821 = vmatpush2.bf16.xpose.msra.mxu0 %v792
    %822 = vmatprep.subr.bf16.mxu0 0
    %823 = vmatpush2.bf16.xpose.msra.mxu0 %v789
    %824 = vmatprep.subr.bf16.mxu0 0
    %825 = vmatpush2.bf16.xpose.msra.mxu0 %v786
    %826 = vmatprep.subr.bf16.mxu0 0
    %827 = vmatpush2.bf16.xpose.msra.mxu0 %v783
    %828 = vmatprep.subr.bf16.mxu0 0
    %829 = vmatpush2.bf16.xpose.msra.mxu0 %v780
    %830 = vmatprep.subr.bf16.mxu0 0
    %831 = vmatpush2.bf16.xpose.msra.mxu0 %v777
    %832 = vmatprep.mubr.bf16.mxu0 0
    %833 = vmatmul.mubr.bf16.gmra.mxu0 %v750
    %v834 = vpop.f32.mrf.mxu0
    %v835 = vadd.f32 %v747, %v834
    %v836 = vpop.f32.mrf.mxu0
    %v837 = vadd.f32 %v747, %v836
    %v838 = vpop.f32.mrf.mxu0
    %v839 = vpop.f32.mrf.mxu0
    %840 = vdwg.mxu0
    %v843 = vcombine.low %v835, %v837
    %v845 = vunpack.c.l.s4 1966171168
    %v846 = vunpack.c.0.s8 %v845
    %v847 = vlaneseq
    %v848 = vshrl.u32 %v847, 7
    %v849 = vsub.s32 %v846, %v848
    %v850 = vrot.slane %v843, %v849
    %v852 = vunpack.c.l.s4 1966171168
    %v853 = vunpack.c.0.s8 %v852
    %v854 = vlaneseq
    %v855 = vshrl.u32 %v854, 7
    %v856 = vsub.s32 %v853, %v855
    %v857 = vrot.slane %v850, %v856
    %v859 = vlaneseq
    %vm860 = vcmp.ge.s32.totalorder %v859, 0
    %vm861 = vcmp.lt.s32.totalorder %v859, 250
    %vm862 = vmand %vm860, %vm861
    %863 = vst.msk [vmem:[%s8] sm:$0x3] %vm862, %v857
    %v864 = vld [vmem:[#allocation2] sm:$0x1]
    %vm865 = vcmask 1040384
    %v866 = vsel %vm865, %v835, -inf
    %vm867 = vcmask 991232
    %v868 = vsel %vm867, %v837, -inf
    %v869 = vmax.f32 %v866, %v868
    %870 = vmax.xlane.f32.xlu0 %v869
    %v871 = vpop.xlane.xlu0 %870
    %v872 = vmax.f32 %v864, %v871
    %v873 = vsub.f32 %v864, %v872
    %v874 = vmul.f32 %v873, 1.442695
    %v875 = vpow.pop %v874
    %877 = vset.pattern.permute.xlu0 0
    %878 = vperm.xlu0 %877, %v872
    %v879 = vpop.permute.xlu0 %878
    %v881 = vlaneseq
    %v882 = vshrl.u32 %v881, 7
    %v883 = vsub.s32 0, %v882
    %v884 = vrot.slane %v879, %v883
    %v885 = vsub.f32 %v835, %v884
    %v886 = vsub.f32 %v837, %v884
    %v887 = vmul.f32 %v885, 1.442695
    %v888 = vpow.pop %v887
    %v889 = vmul.f32 %v886, 1.442695
    %v890 = vpow.pop %v889
    %v891 = vld [vmem:[#allocation3] sm:$0x1]
    %v892 = vmul.f32 %v875, %v891
    %v893 = vsel %vm865, %v888, 0.0
    %v894 = vsel %vm867, %v890, 0.0
    %v895 = vadd.f32 %v893, %v894
    %896 = vadd.xlane.f32.xlu0 %v895
    %v897 = vpop.xlane.xlu0 %896
    %v898 = vadd.f32 %v892, %v897
    %vm899 = vcmask 0
    %900 = vst.msk [vmem:[#allocation3] sm:$0x1] %vm899, %v898
    %v901 = vld [vmem:[#allocation4] sm:$0x1]
    %903 = vset.pattern.permute.xlu0 0
    %904 = vperm.xlu0 %903, %v875
    %v905 = vpop.permute.xlu0 %904
    %v907 = vlaneseq
    %v908 = vshrl.u32 %v907, 7
    %v909 = vsub.s32 0, %v908
    %v910 = vrot.slane %v905, %v909
    %v911 = vmul.f32 %v910, %v901
    %v912 = vpack.c.bf16 %v888, %v888
    %v913 = vpack.c.bf16 %v890, %v890
    %vm914 = vcmask 998400
    %v916 = vsel %vm914, %v913, 0
    %vm918 = vcmask 1044480
    %v920 = vsel %vm918, %v104, 0
    %922 = vmatprep.subr.bf16.mxu0 0
    %923 = vmatpush1.bf16.msra.mxu0 %v96
    %924 = vmatprep.subr.bf16.mxu0 0
    %925 = vmatpush1.bf16.msra.mxu0 %v95
    %926 = vmatprep.subr.bf16.mxu0 0
    %927 = vmatpush1.bf16.msra.mxu0 %v94
    %928 = vmatprep.subr.bf16.mxu0 0
    %929 = vmatpush1.bf16.msra.mxu0 %v93
    %930 = vmatprep.subr.bf16.mxu0 0
    %931 = vmatpush1.bf16.msra.mxu0 %v92
    %932 = vmatprep.subr.bf16.mxu0 0
    %933 = vmatpush1.bf16.msra.mxu0 %v91
    %934 = vmatprep.subr.bf16.mxu0 0
    %935 = vmatpush1.bf16.msra.mxu0 %v90
    %936 = vmatprep.subr.bf16.mxu0 0
    %937 = vmatpush1.bf16.msra.mxu0 %v89
    %938 = vmatprep.subr.bf16.mxu0 0
    %939 = vmatpush2.bf16.msra.mxu0 %v920
    %940 = vmatprep.subr.bf16.mxu0 0
    %941 = vmatpush2.bf16.msra.mxu0 %v103
    %942 = vmatprep.subr.bf16.mxu0 0
    %943 = vmatpush2.bf16.msra.mxu0 %v102
    %944 = vmatprep.subr.bf16.mxu0 0
    %945 = vmatpush2.bf16.msra.mxu0 %v101
    %946 = vmatprep.subr.bf16.mxu0 0
    %947 = vmatpush2.bf16.msra.mxu0 %v100
    %948 = vmatprep.subr.bf16.mxu0 0
    %949 = vmatpush2.bf16.msra.mxu0 %v99
    %950 = vmatprep.subr.bf16.mxu0 0
    %951 = vmatpush2.bf16.msra.mxu0 %v98
    %952 = vmatprep.subr.bf16.mxu0 0
    %953 = vmatpush2.bf16.msra.mxu0 %v97
    %954 = vmatprep.mubr.bf16.mxu0 %v916
    %955 = vmatmul.mubr.bf16.gmra.mxu0 %v912
    %v956 = vpop.f32.mrf.mxu0
    %v957 = vadd.f32 0.0, %v956
    %v958 = vpop.f32.mrf.mxu0
    %v959 = vpop.f32.mrf.mxu0
    %v960 = vpop.f32.mrf.mxu0
    %961 = vdwg.mxu0
    %v962 = vadd.f32 %v911, %v957
    %963 = vst [vmem:[#allocation4] sm:$0x1] %v962
    %964 = vst.msk [vmem:[#allocation2] sm:$0x1] %vm899, %v872
    // Predicated region
    $region38: #{_pooled_forward.1} parent=1 // pred_check
      %p965 = pneg %p49
    $region39: #{_pooled_forward.1} parent=1 // pred_check_branch
      %967 = sbr.rel (%p965) target = $region41
    $region40: #{_pooled_forward.1} parent=1 // pred_region
      %v968 = vld [vmem:[#allocation4] sm:$0x1]
      %v969 = vld [vmem:[#allocation3] sm:$0x1]
      %971 = vset.pattern.permute.xlu0 0
      %972 = vperm.xlu0 %971, %v969
      %v973 = vpop.permute.xlu0 %972
      %v975 = vlaneseq
      %v976 = vshrl.u32 %v975, 7
      %v977 = vsub.s32 0, %v976
      %v978 = vrot.slane %v973, %v977
      %v979 = vrcp.pop %v978
      %v980 = vmul.f32 %v968, %v979
      %981 = vst [vmem:[#allocation11] sm:$0x1] %v980
      %v982 = vld [vmem:[%s6] sm:$0xff]
      %v983 = vld [vmem:[%s6 + $0x8] sm:$0xff]
      %v984 = vld [vmem:[%s6 + $0x10] sm:$0xff]
      %v985 = vld [vmem:[%s6 + $0x18] sm:$0xff]
      %v986 = vld [vmem:[%s6 + $0x20] sm:$0xff]
      %v987 = vld [vmem:[%s6 + $0x28] sm:$0xff]
      %v988 = vld [vmem:[%s6 + $0x30] sm:$0xff]
      %v989 = vld [vmem:[%s6 + $0x38] sm:$0xff]
      %v990 = vld [vmem:[%s6 + $0x40] sm:$0xff]
      %v991 = vld [vmem:[%s6 + $0x48] sm:$0xff]
      %v992 = vld [vmem:[%s6 + $0x50] sm:$0xff]
      %v993 = vld [vmem:[%s6 + $0x58] sm:$0xff]
      %v994 = vld [vmem:[%s6 + $0x60] sm:$0xff]
      %v995 = vld [vmem:[%s6 + $0x68] sm:$0xff]
      %v996 = vld [vmem:[%s6 + $0x70] sm:$0xff]
      %v997 = vld [vmem:[%s6 + $0x78] sm:$0xff]
      %v998 = vld [vmem:[%s7] sm:$0x1]
      %999 = vmatprep.subr.mxu0 0.0
      %1000 = vmatpush1.msra.mxu0 %v997
      %1001 = vmatprep.subr.mxu0 0.0
      %1002 = vmatpush1.msra.mxu0 %v996
      %1003 = vmatprep.subr.mxu0 0.0
      %1004 = vmatpush1.msra.mxu0 %v995
      %1005 = vmatprep.subr.mxu0 0.0
      %1006 = vmatpush1.msra.mxu0 %v994
      %1007 = vmatprep.subr.mxu0 0.0
      %1008 = vmatpush1.msra.mxu0 %v993
      %1009 = vmatprep.subr.mxu0 0.0
      %1010 = vmatpush1.msra.mxu0 %v992
      %1011 = vmatprep.subr.mxu0 0.0
      %1012 = vmatpush1.msra.mxu0 %v991
      %1013 = vmatprep.subr.mxu0 0.0
      %1014 = vmatpush1.msra.mxu0 %v990
      %1015 = vmatprep.subr.mxu0 0.0
      %1016 = vmatpush1.msra.mxu0 %v989
      %1017 = vmatprep.subr.mxu0 0.0
      %1018 = vmatpush1.msra.mxu0 %v988
      %1019 = vmatprep.subr.mxu0 0.0
      %1020 = vmatpush1.msra.mxu0 %v987
      %1021 = vmatprep.subr.mxu0 0.0
      %1022 = vmatpush1.msra.mxu0 %v986
      %1023 = vmatprep.subr.mxu0 0.0
      %1024 = vmatpush1.msra.mxu0 %v985
      %1025 = vmatprep.subr.mxu0 0.0
      %1026 = vmatpush1.msra.mxu0 %v984
      %1027 = vmatprep.subr.mxu0 0.0
      %1028 = vmatpush1.msra.mxu0 %v983
      %1029 = vmatprep.subr.mxu0 0.0
      %1030 = vmatpush1.msra.mxu0 %v982
      %1031 = vmatprep.subr.mxu0 0.0
      %1032 = vmatpush2.msra.mxu0 0.0
      %1033 = vmatprep.subr.mxu0 0.0
      %1034 = vmatpush2.msra.mxu0 0.0
      %1035 = vmatprep.subr.mxu0 0.0
      %1036 = vmatpush2.msra.mxu0 0.0
      %1037 = vmatprep.subr.mxu0 0.0
      %1038 = vmatpush2.msra.mxu0 0.0
      %1039 = vmatprep.subr.mxu0 0.0
      %1040 = vmatpush2.msra.mxu0 0.0
      %1041 = vmatprep.subr.mxu0 0.0
      %1042 = vmatpush2.msra.mxu0 0.0
      %1043 = vmatprep.subr.mxu0 0.0
      %1044 = vmatpush2.msra.mxu0 0.0
      %1045 = vmatprep.subr.mxu0 0.0
      %1046 = vmatpush2.msra.mxu0 0.0
      %1047 = vmatprep.subr.mxu0 0.0
      %1048 = vmatpush2.msra.mxu0 0.0
      %1049 = vmatprep.subr.mxu0 0.0
      %1050 = vmatpush2.msra.mxu0 0.0
      %1051 = vmatprep.subr.mxu0 0.0
      %1052 = vmatpush2.msra.mxu0 0.0
      %1053 = vmatprep.subr.mxu0 0.0
      %1054 = vmatpush2.msra.mxu0 0.0
      %1055 = vmatprep.subr.mxu0 0.0
      %1056 = vmatpush2.msra.mxu0 0.0
      %1057 = vmatprep.subr.mxu0 0.0
      %1058 = vmatpush2.msra.mxu0 0.0
      %1059 = vmatprep.subr.mxu0 0.0
      %1060 = vmatpush2.msra.mxu0 0.0
      %1061 = vmatprep.subr.mxu0 0.0
      %1062 = vmatpush2.msra.mxu0 0.0
      %1063 = vmatprep.mubr.f32.mxu0 0.0
      %1064 = vmatmul.mubr.f32.gmra.mxu0 %v980
      %v1065 = vpop.f32.mrf.mxu0
      %v1066 = vadd.f32 %v998, %v1065
      %v1067 = vpop.f32.mrf.mxu0
      %1068 = vdwg.mxu0
      %vm1069 = vcmask 8192
      %1070 = vst.msk [vmem:[%s10] sm:$0x1] %vm1069, %v1066
    $region41: #{_pooled_forward.1} parent=1 // pred_fallthru
      _
    // Predicated region
    $region42: #{_pooled_forward.1} parent=1 // pred_check
      _
    $region43: #{_pooled_forward.1} parent=1 // pred_check_branch
      %1072 = sbr.rel (0) target = $region45
    $region44: #{_pooled_forward.1} parent=1 // pred_region
      _
    $region45: #{_pooled_forward.1} parent=1 // pred_fallthru
      _
    // Predicated region
    $region46: #{_pooled_forward.1} parent=1 // pred_check
      _
    $region47: #{_pooled_forward.1} parent=1 // pred_check_branch
      %1074 = sbr.rel (0) target = $region49
    $region48: #{_pooled_forward.1} parent=1 // pred_region
      %s1076 = ssub.s32 16, 16
      %1077 = vsyncadd [#allocation10], %s1076
      %s1079 = sshll.u32 [#allocation11], 4
      %s1080 = int_to_ptr.vmem [resolvable:$true] %s1079
      %1082 = dma.vmem_to_hbm [thread:$0]  %s1080, 16, %s9, [#allocation10]
    $region49: #{_pooled_forward.1} parent=1 // pred_fallthru
      _
    // Predicated region
    $region50: #{_pooled_forward.1} parent=1 // pred_check
      _
    $region51: #{_pooled_forward.1} parent=1 // pred_check_branch
      %1084 = sbr.rel (0) target = $region53
    $region52: #{_pooled_forward.1} parent=1 // pred_region
      _
    $region53: #{_pooled_forward.1} parent=1 // pred_fallthru
      _
    // Predicated region
    $region54: #{_pooled_forward.1} parent=1 // pred_check
      _
    $region55: #{_pooled_forward.1} parent=1 // pred_check_branch
      %1086 = sbr.rel (0) target = $region57
    $region56: #{_pooled_forward.1} parent=1 // pred_region
      _
    $region57: #{_pooled_forward.1} parent=1 // pred_fallthru
      _
    // Predicated region
    $region58: #{_pooled_forward.1} parent=1 // pred_check
      _
    $region59: #{_pooled_forward.1} parent=1 // pred_check_branch
      %1088 = sbr.rel (0) target = $region61
    $region60: #{_pooled_forward.1} parent=1 // pred_region
      %1089 = dma.done [#allocation10], 16
    $region61: #{_pooled_forward.1} parent=1 // pred_fallthru
      _
    // Predicated region
    $region62: #{_pooled_forward.1} parent=1 // pred_check
      _
    $region63: #{_pooled_forward.1} parent=1 // pred_check_branch
      %1091 = sbr.rel (0) target = $region65
    $region64: #{_pooled_forward.1} parent=1 // pred_region
      _
    $region65: #{_pooled_forward.1} parent=1 // pred_fallthru
      _
    %1092 = vsyncpa [#allocation9], 1
    %1093 = vsyncpa [#allocation10], 1

</llo_original>
